<compile_context>
chip_gen: v6e
topology: v6e:2x2x1
jax: 0.10.0
libtpu: 0.0.40
codegen_flags: <defaults>
</compile_context>

<pallas_src>
import jax
import jax.numpy as jnp
from jax.experimental import pallas as pl
from jax.experimental.pallas import tpu as pltpu


_INV_SQRT2 = 0.7071067811865476


def _erf_approx(x):
    # Abramowitz & Stegun 7.1.26 polynomial, |abs err| < 1.5e-7 (~f32 eps).
    # TODO(synk): nn.GELU() (approximate='none') uses exact erf; Mosaic has no
    # guaranteed erf lowering, so we use this near-f32-exact polynomial in-kernel.
    a1, a2, a3, a4, a5 = 0.254829592, -0.284496736, 1.421413741, -1.453152027, 1.061405429
    p = 0.3275911
    sgn = jnp.where(x >= 0.0, 1.0, -1.0)
    ax = jnp.abs(x)
    # 1/(1 + p*ax) on the EUP (approx reciprocal) instead of a VALU divide.
    t = pl.reciprocal(1.0 + p * ax, approx=True)
    poly = ((((a5 * t + a4) * t + a3) * t + a2) * t + a1) * t
    return sgn * (1.0 - poly * jnp.exp(-ax * ax))


def _gelu_exact(x):
    return 0.5 * x * (1.0 + _erf_approx(x * _INV_SQRT2))


def _ffn_kernel(x_ref, w1_ref, b1_ref, w2_ref, b2_ref, o_ref):
    x = x_ref[...]                                        # (TM, D_in)
    # fc1: full-K MXU matmul, f32 accumulation.
    h = jnp.dot(x, w1_ref[...], preferred_element_type=jnp.float32) + b1_ref[...]
    # GELU in f32 on the VPU/EUP.
    h = _gelu_exact(h)
    # fc2: full-K MXU matmul, f32 accumulation.
    y = jnp.dot(h.astype(w2_ref.dtype), w2_ref[...],
                preferred_element_type=jnp.float32) + b2_ref[...]
    o_ref[...] = y.astype(o_ref.dtype)


def feedforward(x, w1, b1, w2, b2, *, matmul_dtype=None, row_block=256):
    """y = GELU(x @ w1 + b1) @ w2 + b2, with arbitrary leading dims on x."""
    orig_shape = x.shape
    d_in, d_hid = w1.shape
    d_out = w2.shape[1]
    assert orig_shape[-1] == d_in

    # Flatten every leading dim into rows -> lane-dense 2-D slabs, and many
    # rows per grid step (amortizes the ~0.35us per-step overhead).
    x2 = x.reshape(-1, d_in)
    M = x2.shape[0]

    if matmul_dtype is not None:
        x2 = x2.astype(matmul_dtype)
        w1 = w1.astype(matmul_dtype)
        w2 = w2.astype(matmul_dtype)
    b1 = b1.reshape(1, d_hid).astype(jnp.float32)
    b2 = b2.reshape(1, d_out).astype(jnp.float32)

    # Row tile: full problem if small, else 256 (multiple of 8).
    tm = M if M <= row_block else row_block
    grid = (pl.cdiv(M, tm),)

    wbytes = jnp.dtype(w1.dtype).itemsize
    xbytes = jnp.dtype(x2.dtype).itemsize
    # Resident weights + double-buffered row tiles + f32 hidden intermediate.
    vmem_need = (wbytes * (d_in * d_hid + d_hid * d_out)
                 + 4 * (d_hid + d_out)
                 + 2 * xbytes * tm * d_in
                 + 2 * 4 * tm * d_out
                 + 4 * tm * d_hid)
    vmem_limit = int(min(64 * 2**20, max(2 * vmem_need, 16 * 2**20)))

    cost = pl.CostEstimate(
        flops=2 * M * d_in * d_hid + 2 * M * d_hid * d_out,
        transcendentals=2 * M * d_hid,          # exp + approx-recip per hidden elem
        bytes_accessed=(M * d_in * xbytes
                        + (d_in * d_hid + d_hid * d_out) * wbytes
                        + (d_hid + d_out) * 4
                        + M * d_out * 4),
    )

    out = pl.pallas_call(
        _ffn_kernel,
        out_shape=jax.ShapeDtypeStruct((M, d_out), jnp.float32),
        grid=grid,
        in_specs=[
            pl.BlockSpec((tm, d_in), lambda i: (i, 0)),      # x rows (tiled)
            pl.BlockSpec((d_in, d_hid), lambda i: (0, 0)),   # W1 (VMEM-resident)
            pl.BlockSpec((1, d_hid), lambda i: (0, 0)),      # b1
            pl.BlockSpec((d_hid, d_out), lambda i: (0, 0)),  # W2 (VMEM-resident)
            pl.BlockSpec((1, d_out), lambda i: (0, 0)),      # b2
        ],
        out_specs=pl.BlockSpec((tm, d_out), lambda i: (i, 0)),
        compiler_params=pltpu.CompilerParams(
            dimension_semantics=("parallel",),
            vmem_limit_bytes=vmem_limit),
        cost_estimate=cost,
    )(x2, w1, b1, w2, b2)

    return out.reshape(orig_shape[:-1] + (d_out,)).astype(x.dtype)


def reference(x, w1, b1, w2, b2):
    """Pure-JAX reference mirroring the PyTorch forward (exact-erf GELU)."""
    h = jax.nn.gelu(x @ w1 + b1, approximate=False)
    return h @ w2 + b2


if __name__ == "__main__":
    # Small, lane-dense example shapes (feature dims are multiples of 128 so
    # every block is an unmasked full-lane tile): x is (batch=2, seq=8, 128).
    B, S = 2, 8
    D_IN, D_HID, D_OUT = 128, 256, 128

    key = jax.random.PRNGKey(0)
    ks = jax.random.split(key, 5)
    x = jax.random.normal(ks[0], (B, S, D_IN), dtype=jnp.float32)
    w1 = (0.05 * jax.random.normal(ks[1], (D_IN, D_HID))).astype(jnp.float32)
    b1 = (0.01 * jax.random.normal(ks[2], (D_HID,))).astype(jnp.float32)
    w2 = (0.05 * jax.random.normal(ks[3], (D_HID, D_OUT))).astype(jnp.float32)
    b2 = (0.01 * jax.random.normal(ks[4], (D_OUT,))).astype(jnp.float32)

    out = feedforward(x, w1, b1, w2, b2)   # f32 path (bf16 path available via matmul_dtype)
    jax.block_until_ready(out)

    ref = reference(x, w1, b1, w2, b2)
    assert out.shape == ref.shape == (B, S, D_OUT)
    if not jnp.allclose(out, ref, atol=1e-2, rtol=1e-2):
        raise AssertionError("Pallas kernel output mismatches JAX reference")
    print("KERNEL_OK")
</pallas_src>

<mosaic_0001>
module attributes {stable_mosaic.version = 11 : i64} {
  func.func @_ffn_kernel(%arg0: i32, %arg1: memref<16x128xf32, #tpu.memory_space<vmem>>, %arg2: memref<128x256xf32, #tpu.memory_space<vmem>>, %arg3: memref<1x256xf32, #tpu.memory_space<vmem>>, %arg4: memref<256x128xf32, #tpu.memory_space<vmem>>, %arg5: memref<1x128xf32, #tpu.memory_space<vmem>>, %arg6: memref<16x128xf32, #tpu.memory_space<vmem>>) attributes {dimension_semantics = [#tpu.dimension_semantics<parallel>], iteration_bounds = array<i64: 1>, scalar_prefetch = 0 : i64, scratch_operands = 0 : i64, tpu.core_type = #tpu.core_type<tc>, window_params = [{transform_indices = @transform_0, window_bounds = array<i64: 16, 128>}, {pipeline_mode = #tpu.pipeline_mode<synchronous>, transform_indices = @transform_1, window_bounds = array<i64: 128, 256>}, {pipeline_mode = #tpu.pipeline_mode<synchronous>, transform_indices = @transform_2, window_bounds = array<i64: 1, 256>}, {pipeline_mode = #tpu.pipeline_mode<synchronous>, transform_indices = @transform_3, window_bounds = array<i64: 256, 128>}, {pipeline_mode = #tpu.pipeline_mode<synchronous>, transform_indices = @transform_4, window_bounds = array<i64: 1, 128>}, {transform_indices = @transform_5, window_bounds = array<i64: 16, 128>}]} {
    %c0 = arith.constant 0 : index
    %c0_0 = arith.constant 0 : index
    %0 = vector.load %arg1[%c0, %c0_0] : memref<16x128xf32, #tpu.memory_space<vmem>>, vector<16x128xf32>
    %c0_1 = arith.constant 0 : index
    %c0_2 = arith.constant 0 : index
    %1 = vector.load %arg2[%c0_1, %c0_2] : memref<128x256xf32, #tpu.memory_space<vmem>>, vector<128x256xf32>
    %cst = arith.constant dense<0.000000e+00> : vector<16x256xf32>
    %2 = tpu.matmul %0, %1, %cst {dimension_numbers = #tpu.dot_dimension_numbers<[1], [0], [0], [1], [0, 0, 1, 1], [], []>} : vector<16x128xf32>, vector<128x256xf32>, vector<16x256xf32> -> vector<16x256xf32>
    %c0_3 = arith.constant 0 : index
    %c0_4 = arith.constant 0 : index
    %3 = vector.load %arg3[%c0_3, %c0_4] : memref<1x256xf32, #tpu.memory_space<vmem>>, vector<1x256xf32>
    %4 = vector.broadcast %3 : vector<1x256xf32> to vector<16x256xf32>
    %5 = arith.addf %2, %4 : vector<16x256xf32>
    %cst_5 = arith.constant 5.000000e-01 : f32
    %6 = vector.broadcast %cst_5 : f32 to vector<16x256xf32>
    %7 = arith.mulf %6, %5 : vector<16x256xf32>
    %cst_6 = arith.constant 0.707106769 : f32
    %8 = vector.broadcast %cst_6 : f32 to vector<16x256xf32>
    %9 = arith.mulf %5, %8 : vector<16x256xf32>
    %cst_7 = arith.constant 0.000000e+00 : f32
    %10 = vector.broadcast %cst_7 : f32 to vector<16x256xf32>
    %11 = arith.cmpf oge, %9, %10 : vector<16x256xf32>
    %cst_8 = arith.constant 1.000000e+00 : f32
    %cst_9 = arith.constant -1.000000e+00 : f32
    %12 = vector.broadcast %cst_8 : f32 to vector<16x256xf32>
    %13 = vector.broadcast %cst_9 : f32 to vector<16x256xf32>
    %14 = arith.select %11, %12, %13 : vector<16x256xi1>, vector<16x256xf32>
    %15 = math.absf %9 : vector<16x256xf32>
    %cst_10 = arith.constant 0.327591091 : f32
    %16 = vector.broadcast %cst_10 : f32 to vector<16x256xf32>
    %17 = arith.mulf %16, %15 : vector<16x256xf32>
    %cst_11 = arith.constant 1.000000e+00 : f32
    %18 = vector.broadcast %cst_11 : f32 to vector<16x256xf32>
    %19 = arith.addf %18, %17 : vector<16x256xf32>
    %20 = tpu.reciprocal %19 {approx = true} : vector<16x256xf32> -> vector<16x256xf32>
    %cst_12 = arith.constant 1.06140542 : f32
    %21 = vector.broadcast %cst_12 : f32 to vector<16x256xf32>
    %22 = arith.mulf %21, %20 : vector<16x256xf32>
    %cst_13 = arith.constant -1.45315206 : f32
    %23 = vector.broadcast %cst_13 : f32 to vector<16x256xf32>
    %24 = arith.addf %22, %23 : vector<16x256xf32>
    %25 = arith.mulf %24, %20 : vector<16x256xf32>
    %cst_14 = arith.constant 1.42141378 : f32
    %26 = vector.broadcast %cst_14 : f32 to vector<16x256xf32>
    %27 = arith.addf %25, %26 : vector<16x256xf32>
    %28 = arith.mulf %27, %20 : vector<16x256xf32>
    %cst_15 = arith.constant -0.284496725 : f32
    %29 = vector.broadcast %cst_15 : f32 to vector<16x256xf32>
    %30 = arith.addf %28, %29 : vector<16x256xf32>
    %31 = arith.mulf %30, %20 : vector<16x256xf32>
    %cst_16 = arith.constant 0.254829586 : f32
    %32 = vector.broadcast %cst_16 : f32 to vector<16x256xf32>
    %33 = arith.addf %31, %32 : vector<16x256xf32>
    %34 = arith.mulf %33, %20 : vector<16x256xf32>
    %cst_17 = arith.constant 0.000000e+00 : f32
    %35 = vector.broadcast %cst_17 : f32 to vector<16x256xf32>
    %36 = arith.subf %35, %15 : vector<16x256xf32>
    %37 = arith.mulf %36, %15 : vector<16x256xf32>
    %38 = math.exp %37 : vector<16x256xf32>
    %39 = arith.mulf %34, %38 : vector<16x256xf32>
    %cst_18 = arith.constant 1.000000e+00 : f32
    %40 = vector.broadcast %cst_18 : f32 to vector<16x256xf32>
    %41 = arith.subf %40, %39 : vector<16x256xf32>
    %42 = arith.mulf %14, %41 : vector<16x256xf32>
    %cst_19 = arith.constant 1.000000e+00 : f32
    %43 = vector.broadcast %cst_19 : f32 to vector<16x256xf32>
    %44 = arith.addf %43, %42 : vector<16x256xf32>
    %45 = arith.mulf %7, %44 : vector<16x256xf32>
    %c0_20 = arith.constant 0 : index
    %c0_21 = arith.constant 0 : index
    %46 = vector.load %arg4[%c0_20, %c0_21] : memref<256x128xf32, #tpu.memory_space<vmem>>, vector<256x128xf32>
    %cst_22 = arith.constant dense<0.000000e+00> : vector<16x128xf32>
    %47 = tpu.matmul %45, %46, %cst_22 {dimension_numbers = #tpu.dot_dimension_numbers<[1], [0], [0], [1], [0, 0, 1, 1], [], []>} : vector<16x256xf32>, vector<256x128xf32>, vector<16x128xf32> -> vector<16x128xf32>
    %c0_23 = arith.constant 0 : index
    %c0_24 = arith.constant 0 : index
    %48 = vector.load %arg5[%c0_23, %c0_24] : memref<1x128xf32, #tpu.memory_space<vmem>>, vector<1x128xf32>
    %49 = vector.broadcast %48 : vector<1x128xf32> to vector<16x128xf32>
    %50 = arith.addf %47, %49 : vector<16x128xf32>
    %c0_25 = arith.constant 0 : index
    %c0_26 = arith.constant 0 : index
    %51 = vector.load %arg6[%c0_25, %c0_26] : memref<16x128xf32, #tpu.memory_space<vmem>>, vector<16x128xf32>
    tpu.vector_store %arg6[%c0_25, %c0_26], %50 {strides = array<i32>} : memref<16x128xf32, #tpu.memory_space<vmem>>, vector<16x128xf32>,
    return
  }
  func.func @transform_0(%arg0: i32) -> (i32, i32) {
    %c0_i32 = arith.constant 0 : i32
    %c0_i32_0 = arith.constant 0 : i32
    return %arg0, %c0_i32 : i32, i32
  }
  func.func @transform_1(%arg0: i32) -> (i32, i32) {
    %c0_i32 = arith.constant 0 : i32
    %c0_i32_0 = arith.constant 0 : i32
    %c0_i32_1 = arith.constant 0 : i32
    return %c0_i32, %c0_i32_0 : i32, i32
  }
  func.func @transform_2(%arg0: i32) -> (i32, i32) {
    %c0_i32 = arith.constant 0 : i32
    %c0_i32_0 = arith.constant 0 : i32
    %c0_i32_1 = arith.constant 0 : i32
    return %c0_i32, %c0_i32_0 : i32, i32
  }
  func.func @transform_3(%arg0: i32) -> (i32, i32) {
    %c0_i32 = arith.constant 0 : i32
    %c0_i32_0 = arith.constant 0 : i32
    %c0_i32_1 = arith.constant 0 : i32
    return %c0_i32, %c0_i32_0 : i32, i32
  }
  func.func @transform_4(%arg0: i32) -> (i32, i32) {
    %c0_i32 = arith.constant 0 : i32
    %c0_i32_0 = arith.constant 0 : i32
    %c0_i32_1 = arith.constant 0 : i32
    return %c0_i32, %c0_i32_0 : i32, i32
  }
  func.func @transform_5(%arg0: i32) -> (i32, i32) {
    %c0_i32 = arith.constant 0 : i32
    %c0_i32_0 = arith.constant 0 : i32
    return %arg0, %c0_i32 : i32, i32
  }
}

</mosaic_0001>

<llo_original>
// kernel: tpu_custom_call.1
$region0: #{tpu_custom_call.1}
  #allocation0 [shape = 'u32[]', space=smem, size = 0x4, offset = 0x4, fixed_abs, tag = 'smem constant byte address 0x4 - core index']
  #allocation1 [shape = 'u32[144,128]{1,0:T(1,128)}', space=vmem, size = 0x12000, scoped, tag = 'internal scratch']
  %s0 = inlined_call_operand.hbm [shape: f32[16,128], index: 0, kind: input, shape index: {}]
  %s1 = inlined_call_operand.hbm [shape: f32[128,256], index: 1, kind: input, shape index: {}]
  %s2 = inlined_call_operand.vmem [shape: f32[1,256], index: 2, kind: input, shape index: {}]
  %s3 = inlined_call_operand.hbm [shape: f32[256,128], index: 3, kind: input, shape index: {}]
  %s4 = inlined_call_operand.vmem [shape: f32[1,128], index: 4, kind: input, shape index: {}]
  %s5 = inlined_call_operand.hbm [shape: f32[16,128], index: 5, kind: output, shape index: {}]
  %s6 = sld [smem:[#allocation0]]
  $region42: #{tpu_custom_call.1} parent=0
    _
  %s8 = ssub.s32 1, %s6
  %s9 = scalar_select 0, %s8, %s6
  $region1: #{tpu_custom_call.1} parent=0
    #allocation2 [shape = 'u8[8192]{0}', space=vmem, size = 0x2000, scoped, tag = 'input window, operand 0, single buffered']
    #allocation3 [shape = 's32[1]{0}', space=sflag, size = 0x4, scoped, tag = 'scoped memory for tpu_custom_call.1']
    #allocation4 [shape = 's32[1]{0}', space=sflag, size = 0x4, scoped, tag = 'scoped memory for tpu_custom_call.1']
    #allocation5 [shape = 'u8[131072]{0}', space=vmem, size = 0x20000, scoped, tag = 'input window, operand 1, single buffered']
    #allocation6 [shape = 's32[1]{0}', space=sflag, size = 0x4, scoped, tag = 'scoped memory for tpu_custom_call.1']
    #allocation7 [shape = 'u8[131072]{0}', space=vmem, size = 0x20000, scoped, tag = 'input window, operand 3, single buffered']
    #allocation8 [shape = 'u8[8192]{0}', space=vmem, size = 0x2000, scoped, tag = 'output window, operand 0, single buffered']
    %10 = vsyncpa [#allocation3], 0
    %11 = vsyncpa [#allocation6], 0
    %12 = vsyncpa [#allocation4], 0
    // Predicated region
    $region2: #{tpu_custom_call.1} parent=1 // pred_check
      _
    $region3: #{tpu_custom_call.1} parent=1 // pred_check_branch
      %14 = sbr.rel (0) target = $region5
    $region4: #{tpu_custom_call.1} parent=1 // pred_region
      %s16 = ssub.s32 256, 256
      %17 = vsyncadd [#allocation3], %s16
      %s18 = sshll.u32 [#allocation2], 4
      %s19 = int_to_ptr.vmem [resolvable:$true] %s18
      %24 = dma.hbm_to_vmem [thread:$0]  %s0, 256, %s19, [#allocation3], 128, 128, 8
    $region5: #{tpu_custom_call.1} parent=1 // pred_fallthru
      _
    // Predicated region
    $region6: #{tpu_custom_call.1} parent=1 // pred_check
      _
    $region7: #{tpu_custom_call.1} parent=1 // pred_check_branch
      %26 = sbr.rel (0) target = $region9
    $region8: #{tpu_custom_call.1} parent=1 // pred_region
      %s28 = ssub.s32 4096, 4096
      %29 = vsyncadd [#allocation6], %s28
      %s30 = sshll.u32 [#allocation5], 4
      %s31 = int_to_ptr.vmem [resolvable:$true] %s30
      %36 = dma.hbm_to_vmem [thread:$0]  %s1, 4096, %s31, [#allocation6], 256, 256, 16
    $region9: #{tpu_custom_call.1} parent=1 // pred_fallthru
      _
    // Predicated region
    $region10: #{tpu_custom_call.1} parent=1 // pred_check
      _
    $region11: #{tpu_custom_call.1} parent=1 // pred_check_branch
      %38 = sbr.rel (0) target = $region13
    $region12: #{tpu_custom_call.1} parent=1 // pred_region
      _
    $region13: #{tpu_custom_call.1} parent=1 // pred_fallthru
      _
    // Predicated region
    $region14: #{tpu_custom_call.1} parent=1 // pred_check
      _
    $region15: #{tpu_custom_call.1} parent=1 // pred_check_branch
      %40 = sbr.rel (0) target = $region17
    $region16: #{tpu_custom_call.1} parent=1 // pred_region
      %s42 = ssub.s32 4096, 4096
      %43 = vsyncadd [#allocation6], %s42
      %s44 = sshll.u32 [#allocation7], 4
      %s45 = int_to_ptr.vmem [resolvable:$true] %s44
      %50 = dma.hbm_to_vmem [thread:$0]  %s3, 4096, %s45, [#allocation6], 128, 128, 8
    $region17: #{tpu_custom_call.1} parent=1 // pred_fallthru
      _
    // Predicated region
    $region18: #{tpu_custom_call.1} parent=1 // pred_check
      _
    $region19: #{tpu_custom_call.1} parent=1 // pred_check_branch
      %52 = sbr.rel (0) target = $region21
    $region20: #{tpu_custom_call.1} parent=1 // pred_region
      _
    $region21: #{tpu_custom_call.1} parent=1 // pred_fallthru
      _
    // Predicated region
    $region22: #{tpu_custom_call.1} parent=1 // pred_check
      _
    $region23: #{tpu_custom_call.1} parent=1 // pred_check_branch
      %54 = sbr.rel (0) target = $region25
    $region24: #{tpu_custom_call.1} parent=1 // pred_region
      %55 = dma.done [#allocation3], 256
    $region25: #{tpu_custom_call.1} parent=1 // pred_fallthru
      _
    // Predicated region
    $region26: #{tpu_custom_call.1} parent=1 // pred_check
      _
    $region27: #{tpu_custom_call.1} parent=1 // pred_check_branch
      %57 = sbr.rel (0) target = $region29
    $region28: #{tpu_custom_call.1} parent=1 // pred_region
      %58 = dma.done [#allocation6], 4096
    $region29: #{tpu_custom_call.1} parent=1 // pred_fallthru
      _
    // Predicated region
    $region30: #{tpu_custom_call.1} parent=1 // pred_check
      _
    $region31: #{tpu_custom_call.1} parent=1 // pred_check_branch
      %60 = sbr.rel (0) target = $region33
    $region32: #{tpu_custom_call.1} parent=1 // pred_region
      %61 = dma.done [#allocation6], 4096
    $region33: #{tpu_custom_call.1} parent=1 // pred_fallthru
      _
    %v62 = vld [vmem:[#allocation2] sm:$0xff]
    %v63 = vld [vmem:[#allocation2 + $0x8] sm:$0xff]
    %v64 = vld [vmem:[#allocation5] sm:$0xff]
    %v65 = vld [vmem:[#allocation5 + $0x8] sm:$0xff]
    %v66 = vld [vmem:[#allocation5 + $0x10] sm:$0xff]
    %v67 = vld [vmem:[#allocation5 + $0x18] sm:$0xff]
    %v68 = vld [vmem:[#allocation5 + $0x20] sm:$0xff]
    %v69 = vld [vmem:[#allocation5 + $0x28] sm:$0xff]
    %v70 = vld [vmem:[#allocation5 + $0x30] sm:$0xff]
    %v71 = vld [vmem:[#allocation5 + $0x38] sm:$0xff]
    %v72 = vld [vmem:[#allocation5 + $0x40] sm:$0xff]
    %v73 = vld [vmem:[#allocation5 + $0x48] sm:$0xff]
    %v74 = vld [vmem:[#allocation5 + $0x50] sm:$0xff]
    %v75 = vld [vmem:[#allocation5 + $0x58] sm:$0xff]
    %v76 = vld [vmem:[#allocation5 + $0x60] sm:$0xff]
    %v77 = vld [vmem:[#allocation5 + $0x68] sm:$0xff]
    %v78 = vld [vmem:[#allocation5 + $0x70] sm:$0xff]
    %v79 = vld [vmem:[#allocation5 + $0x78] sm:$0xff]
    %v80 = vld [vmem:[#allocation5 + $0x80] sm:$0xff]
    %v81 = vld [vmem:[#allocation5 + $0x88] sm:$0xff]
    %v82 = vld [vmem:[#allocation5 + $0x90] sm:$0xff]
    %v83 = vld [vmem:[#allocation5 + $0x98] sm:$0xff]
    %v84 = vld [vmem:[#allocation5 + $0xa0] sm:$0xff]
    %v85 = vld [vmem:[#allocation5 + $0xa8] sm:$0xff]
    %v86 = vld [vmem:[#allocation5 + $0xb0] sm:$0xff]
    %v87 = vld [vmem:[#allocation5 + $0xb8] sm:$0xff]
    %v88 = vld [vmem:[#allocation5 + $0xc0] sm:$0xff]
    %v89 = vld [vmem:[#allocation5 + $0xc8] sm:$0xff]
    %v90 = vld [vmem:[#allocation5 + $0xd0] sm:$0xff]
    %v91 = vld [vmem:[#allocation5 + $0xd8] sm:$0xff]
    %v92 = vld [vmem:[#allocation5 + $0xe0] sm:$0xff]
    %v93 = vld [vmem:[#allocation5 + $0xe8] sm:$0xff]
    %v94 = vld [vmem:[#allocation5 + $0xf0] sm:$0xff]
    %v95 = vld [vmem:[#allocation5 + $0xf8] sm:$0xff]
    %v96 = vld [vmem:[%s2] sm:$0x3]
    %v98 = vlaneseq
    %v99 = vshrl.u32 %v98, 7
    %v100 = vsub.s32 0, %v99
    %v101 = vrot.slane %v96, %v100
    %v102 = vlaneseq
    %v103 = vshrl.u32 %v102, 7
    %v104 = vsub.s32 1, %v103
    %v105 = vrot.slane %v96, %v104
    %108 = vmatprep.subr.mxu0 %v95
    %109 = vmatpush1.msra.mxu0 %v94
    %110 = vmatprep.subr.mxu0 %v93
    %111 = vmatpush1.msra.mxu0 %v92
    %112 = vmatprep.subr.mxu0 %v91
    %113 = vmatpush1.msra.mxu0 %v90
    %114 = vmatprep.subr.mxu0 %v89
    %115 = vmatpush1.msra.mxu0 %v88
    %116 = vmatprep.subr.mxu0 %v87
    %117 = vmatpush1.msra.mxu0 %v86
    %118 = vmatprep.subr.mxu0 %v85
    %119 = vmatpush1.msra.mxu0 %v84
    %120 = vmatprep.subr.mxu0 %v83
    %121 = vmatpush1.msra.mxu0 %v82
    %122 = vmatprep.subr.mxu0 %v81
    %123 = vmatpush1.msra.mxu0 %v80
    %124 = vmatprep.subr.mxu0 %v79
    %125 = vmatpush1.msra.mxu0 %v78
    %126 = vmatprep.subr.mxu0 %v77
    %127 = vmatpush1.msra.mxu0 %v76
    %128 = vmatprep.subr.mxu0 %v75
    %129 = vmatpush1.msra.mxu0 %v74
    %130 = vmatprep.subr.mxu0 %v73
    %131 = vmatpush1.msra.mxu0 %v72
    %132 = vmatprep.subr.mxu0 %v71
    %133 = vmatpush1.msra.mxu0 %v70
    %134 = vmatprep.subr.mxu0 %v69
    %135 = vmatpush1.msra.mxu0 %v68
    %136 = vmatprep.subr.mxu0 %v67
    %137 = vmatpush1.msra.mxu0 %v66
    %138 = vmatprep.subr.mxu0 %v65
    %139 = vmatpush1.msra.mxu0 %v64
    %140 = vmatprep.subr.mxu0 0.0
    %141 = vmatpush2.msra.mxu0 0.0
    %142 = vmatprep.subr.mxu0 0.0
    %143 = vmatpush2.msra.mxu0 0.0
    %144 = vmatprep.subr.mxu0 0.0
    %145 = vmatpush2.msra.mxu0 0.0
    %146 = vmatprep.subr.mxu0 0.0
    %147 = vmatpush2.msra.mxu0 0.0
    %148 = vmatprep.subr.mxu0 0.0
    %149 = vmatpush2.msra.mxu0 0.0
    %150 = vmatprep.subr.mxu0 0.0
    %151 = vmatpush2.msra.mxu0 0.0
    %152 = vmatprep.subr.mxu0 0.0
    %153 = vmatpush2.msra.mxu0 0.0
    %154 = vmatprep.subr.mxu0 0.0
    %155 = vmatpush2.msra.mxu0 0.0
    %156 = vmatprep.subr.mxu0 0.0
    %157 = vmatpush2.msra.mxu0 0.0
    %158 = vmatprep.subr.mxu0 0.0
    %159 = vmatpush2.msra.mxu0 0.0
    %160 = vmatprep.subr.mxu0 0.0
    %161 = vmatpush2.msra.mxu0 0.0
    %162 = vmatprep.subr.mxu0 0.0
    %163 = vmatpush2.msra.mxu0 0.0
    %164 = vmatprep.subr.mxu0 0.0
    %165 = vmatpush2.msra.mxu0 0.0
    %166 = vmatprep.subr.mxu0 0.0
    %167 = vmatpush2.msra.mxu0 0.0
    %168 = vmatprep.subr.mxu0 0.0
    %169 = vmatpush2.msra.mxu0 0.0
    %170 = vmatprep.subr.mxu0 0.0
    %171 = vmatpush2.msra.mxu0 0.0
    %172 = vmatprep.mubr.f32.mxu0 0.0
    %173 = vmatmul.mubr.f32.gmra.mxu0 %v62
    %v174 = vpop.f32.mrf.mxu0
    %v175 = vadd.f32 %v101, %v174
    %v176 = vpop.f32.mrf.mxu0
    %v177 = vadd.f32 %v105, %v176
    %178 = vmatprep.mubr.f32.mxu0 0.0
    %179 = vmatmul.mubr.f32.gmra.mxu0 %v63
    %v180 = vpop.f32.mrf.mxu0
    %v181 = vadd.f32 %v101, %v180
    %v182 = vpop.f32.mrf.mxu0
    %v183 = vadd.f32 %v105, %v182
    %184 = vdwg.mxu0
    %v185 = vmul.f32 %v175, 0.5
    %v186 = vmul.f32 %v177, 0.5
    %v187 = vmul.f32 %v181, 0.5
    %v188 = vmul.f32 %v183, 0.5
    %v189 = vmul.f32 %v175, 0.70710677
    %v190 = vmul.f32 %v177, 0.70710677
    %v191 = vmul.f32 %v181, 0.70710677
    %v192 = vmul.f32 %v183, 0.70710677
    %vm193 = vcmp.ge.f32.partialorder %v189, 0.0
    %vm194 = vcmp.ge.f32.partialorder %v190, 0.0
    %vm195 = vcmp.ge.f32.partialorder %v191, 0.0
    %vm196 = vcmp.ge.f32.partialorder %v192, 0.0
    %v197 = vsel %vm193, 1.0, -1.0
    %v198 = vsel %vm194, 1.0, -1.0
    %v199 = vsel %vm195, 1.0, -1.0
    %v200 = vsel %vm196, 1.0, -1.0
    %v201 = vand.u32 2147483647, %v189
    %v202 = vand.u32 2147483647, %v190
    %v203 = vand.u32 2147483647, %v191
    %v204 = vand.u32 2147483647, %v192
    %v205 = vmul.f32 %v201, 0.3275911
    %v206 = vmul.f32 %v202, 0.3275911
    %v207 = vmul.f32 %v203, 0.3275911
    %v208 = vmul.f32 %v204, 0.3275911
    %v209 = vadd.f32 %v205, 1.0
    %v210 = vadd.f32 %v206, 1.0
    %v211 = vadd.f32 %v207, 1.0
    %v212 = vadd.f32 %v208, 1.0
    %v213 = vrcp.pop %v209
    %v214 = vrcp.pop %v210
    %v215 = vrcp.pop %v211
    %v216 = vrcp.pop %v212
    %v217 = vmul.f32 %v213, 1.0614054
    %v218 = vmul.f32 %v214, 1.0614054
    %v219 = vmul.f32 %v215, 1.0614054
    %v220 = vmul.f32 %v216, 1.0614054
    %v221 = vadd.f32 %v217, -1.4531521
    %v222 = vadd.f32 %v218, -1.4531521
    %v223 = vadd.f32 %v219, -1.4531521
    %v224 = vadd.f32 %v220, -1.4531521
    %v225 = vmul.f32 %v221, %v213
    %v226 = vmul.f32 %v222, %v214
    %v227 = vmul.f32 %v223, %v215
    %v228 = vmul.f32 %v224, %v216
    %v229 = vadd.f32 %v225, 1.4214138
    %v230 = vadd.f32 %v226, 1.4214138
    %v231 = vadd.f32 %v227, 1.4214138
    %v232 = vadd.f32 %v228, 1.4214138
    %v233 = vmul.f32 %v229, %v213
    %v234 = vmul.f32 %v230, %v214
    %v235 = vmul.f32 %v231, %v215
    %v236 = vmul.f32 %v232, %v216
    %v237 = vadd.f32 %v233, -0.28449672
    %v238 = vadd.f32 %v234, -0.28449672
    %v239 = vadd.f32 %v235, -0.28449672
    %v240 = vadd.f32 %v236, -0.28449672
    %v241 = vmul.f32 %v237, %v213
    %v242 = vmul.f32 %v238, %v214
    %v243 = vmul.f32 %v239, %v215
    %v244 = vmul.f32 %v240, %v216
    %v245 = vadd.f32 %v241, 0.2548296
    %v246 = vadd.f32 %v242, 0.2548296
    %v247 = vadd.f32 %v243, 0.2548296
    %v248 = vadd.f32 %v244, 0.2548296
    %v249 = vmul.f32 %v245, %v213
    %v250 = vmul.f32 %v246, %v214
    %v251 = vmul.f32 %v247, %v215
    %v252 = vmul.f32 %v248, %v216
    %v253 = vsub.f32 0.0, %v201
    %v254 = vsub.f32 0.0, %v202
    %v255 = vsub.f32 0.0, %v203
    %v256 = vsub.f32 0.0, %v204
    %v257 = vmul.f32 %v253, %v201
    %v258 = vmul.f32 %v254, %v202
    %v259 = vmul.f32 %v255, %v203
    %v260 = vmul.f32 %v256, %v204
    %v261 = vmul.f32 %v257, 1.442695
    %v262 = vpow.pop %v261
    %v263 = vmul.f32 %v258, 1.442695
    %v264 = vpow.pop %v263
    %v265 = vmul.f32 %v259, 1.442695
    %v266 = vpow.pop %v265
    %v267 = vmul.f32 %v260, 1.442695
    %v268 = vpow.pop %v267
    %v269 = vmul.f32 %v249, %v262
    %v270 = vmul.f32 %v250, %v264
    %v271 = vmul.f32 %v251, %v266
    %v272 = vmul.f32 %v252, %v268
    %v273 = vsub.f32 1.0, %v269
    %v274 = vsub.f32 1.0, %v270
    %v275 = vsub.f32 1.0, %v271
    %v276 = vsub.f32 1.0, %v272
    %v277 = vmul.f32 %v197, %v273
    %v278 = vmul.f32 %v198, %v274
    %v279 = vmul.f32 %v199, %v275
    %v280 = vmul.f32 %v200, %v276
    %v281 = vadd.f32 %v277, 1.0
    %v282 = vadd.f32 %v278, 1.0
    %v283 = vadd.f32 %v279, 1.0
    %v284 = vadd.f32 %v280, 1.0
    %v285 = vmul.f32 %v185, %v281
    %v286 = vmul.f32 %v186, %v282
    %v287 = vmul.f32 %v187, %v283
    %v288 = vmul.f32 %v188, %v284
    %v289 = vld [vmem:[#allocation7] sm:$0xff]
    %v290 = vld [vmem:[#allocation7 + $0x8] sm:$0xff]
    %v291 = vld [vmem:[#allocation7 + $0x10] sm:$0xff]
    %v292 = vld [vmem:[#allocation7 + $0x18] sm:$0xff]
    %v293 = vld [vmem:[#allocation7 + $0x20] sm:$0xff]
    %v294 = vld [vmem:[#allocation7 + $0x28] sm:$0xff]
    %v295 = vld [vmem:[#allocation7 + $0x30] sm:$0xff]
    %v296 = vld [vmem:[#allocation7 + $0x38] sm:$0xff]
    %v297 = vld [vmem:[#allocation7 + $0x40] sm:$0xff]
    %v298 = vld [vmem:[#allocation7 + $0x48] sm:$0xff]
    %v299 = vld [vmem:[#allocation7 + $0x50] sm:$0xff]
    %v300 = vld [vmem:[#allocation7 + $0x58] sm:$0xff]
    %v301 = vld [vmem:[#allocation7 + $0x60] sm:$0xff]
    %v302 = vld [vmem:[#allocation7 + $0x68] sm:$0xff]
    %v303 = vld [vmem:[#allocation7 + $0x70] sm:$0xff]
    %v304 = vld [vmem:[#allocation7 + $0x78] sm:$0xff]
    %v305 = vld [vmem:[#allocation7 + $0x80] sm:$0xff]
    %v306 = vld [vmem:[#allocation7 + $0x88] sm:$0xff]
    %v307 = vld [vmem:[#allocation7 + $0x90] sm:$0xff]
    %v308 = vld [vmem:[#allocation7 + $0x98] sm:$0xff]
    %v309 = vld [vmem:[#allocation7 + $0xa0] sm:$0xff]
    %v310 = vld [vmem:[#allocation7 + $0xa8] sm:$0xff]
    %v311 = vld [vmem:[#allocation7 + $0xb0] sm:$0xff]
    %v312 = vld [vmem:[#allocation7 + $0xb8] sm:$0xff]
    %v313 = vld [vmem:[#allocation7 + $0xc0] sm:$0xff]
    %v314 = vld [vmem:[#allocation7 + $0xc8] sm:$0xff]
    %v315 = vld [vmem:[#allocation7 + $0xd0] sm:$0xff]
    %v316 = vld [vmem:[#allocation7 + $0xd8] sm:$0xff]
    %v317 = vld [vmem:[#allocation7 + $0xe0] sm:$0xff]
    %v318 = vld [vmem:[#allocation7 + $0xe8] sm:$0xff]
    %v319 = vld [vmem:[#allocation7 + $0xf0] sm:$0xff]
    %v320 = vld [vmem:[#allocation7 + $0xf8] sm:$0xff]
    %v321 = vld [vmem:[%s4] sm:$0x1]
    %v323 = vlaneseq
    %v324 = vshrl.u32 %v323, 7
    %v325 = vsub.s32 0, %v324
    %v326 = vrot.slane %v321, %v325
    %328 = vmatprep.subr.mxu0 0.0
    %329 = vmatpush1.msra.mxu0 %v304
    %330 = vmatprep.subr.mxu0 0.0
    %331 = vmatpush1.msra.mxu0 %v303
    %332 = vmatprep.subr.mxu0 0.0
    %333 = vmatpush1.msra.mxu0 %v302
    %334 = vmatprep.subr.mxu0 0.0
    %335 = vmatpush1.msra.mxu0 %v301
    %336 = vmatprep.subr.mxu0 0.0
    %337 = vmatpush1.msra.mxu0 %v300
    %338 = vmatprep.subr.mxu0 0.0
    %339 = vmatpush1.msra.mxu0 %v299
    %340 = vmatprep.subr.mxu0 0.0
    %341 = vmatpush1.msra.mxu0 %v298
    %342 = vmatprep.subr.mxu0 0.0
    %343 = vmatpush1.msra.mxu0 %v297
    %344 = vmatprep.subr.mxu0 0.0
    %345 = vmatpush1.msra.mxu0 %v296
    %346 = vmatprep.subr.mxu0 0.0
    %347 = vmatpush1.msra.mxu0 %v295
    %348 = vmatprep.subr.mxu0 0.0
    %349 = vmatpush1.msra.mxu0 %v294
    %350 = vmatprep.subr.mxu0 0.0
    %351 = vmatpush1.msra.mxu0 %v293
    %352 = vmatprep.subr.mxu0 0.0
    %353 = vmatpush1.msra.mxu0 %v292
    %354 = vmatprep.subr.mxu0 0.0
    %355 = vmatpush1.msra.mxu0 %v291
    %356 = vmatprep.subr.mxu0 0.0
    %357 = vmatpush1.msra.mxu0 %v290
    %358 = vmatprep.subr.mxu0 0.0
    %359 = vmatpush1.msra.mxu0 %v289
    %360 = vmatprep.subr.mxu0 0.0
    %361 = vmatpush2.msra.mxu0 %v320
    %362 = vmatprep.subr.mxu0 0.0
    %363 = vmatpush2.msra.mxu0 %v319
    %364 = vmatprep.subr.mxu0 0.0
    %365 = vmatpush2.msra.mxu0 %v318
    %366 = vmatprep.subr.mxu0 0.0
    %367 = vmatpush2.msra.mxu0 %v317
    %368 = vmatprep.subr.mxu0 0.0
    %369 = vmatpush2.msra.mxu0 %v316
    %370 = vmatprep.subr.mxu0 0.0
    %371 = vmatpush2.msra.mxu0 %v315
    %372 = vmatprep.subr.mxu0 0.0
    %373 = vmatpush2.msra.mxu0 %v314
    %374 = vmatprep.subr.mxu0 0.0
    %375 = vmatpush2.msra.mxu0 %v313
    %376 = vmatprep.subr.mxu0 0.0
    %377 = vmatpush2.msra.mxu0 %v312
    %378 = vmatprep.subr.mxu0 0.0
    %379 = vmatpush2.msra.mxu0 %v311
    %380 = vmatprep.subr.mxu0 0.0
    %381 = vmatpush2.msra.mxu0 %v310
    %382 = vmatprep.subr.mxu0 0.0
    %383 = vmatpush2.msra.mxu0 %v309
    %384 = vmatprep.subr.mxu0 0.0
    %385 = vmatpush2.msra.mxu0 %v308
    %386 = vmatprep.subr.mxu0 0.0
    %387 = vmatpush2.msra.mxu0 %v307
    %388 = vmatprep.subr.mxu0 0.0
    %389 = vmatpush2.msra.mxu0 %v306
    %390 = vmatprep.subr.mxu0 0.0
    %391 = vmatpush2.msra.mxu0 %v305
    %392 = vmatprep.mubr.f32.mxu0 %v286
    %393 = vmatmul.mubr.f32.gmra.mxu0 %v285
    %v394 = vpop.f32.mrf.mxu0
    %v395 = vadd.f32 %v326, %v394
    %v396 = vpop.f32.mrf.mxu0
    %397 = vmatprep.mubr.f32.mxu0 %v288
    %398 = vmatmul.mubr.f32.gmra.mxu0 %v287
    %v399 = vpop.f32.mrf.mxu0
    %v400 = vadd.f32 %v326, %v399
    %v401 = vpop.f32.mrf.mxu0
    %402 = vdwg.mxu0
    %403 = vst [vmem:[#allocation8] sm:$0xff] %v395
    %404 = vst [vmem:[#allocation8 + $0x8] sm:$0xff] %v400
    // Predicated region
    $region34: #{tpu_custom_call.1} parent=1 // pred_check
      _
    $region35: #{tpu_custom_call.1} parent=1 // pred_check_branch
      %406 = sbr.rel (0) target = $region37
    $region36: #{tpu_custom_call.1} parent=1 // pred_region
      %s408 = ssub.s32 256, 256
      %409 = vsyncadd [#allocation4], %s408
      %s410 = sshll.u32 [#allocation8], 4
      %s411 = int_to_ptr.vmem [resolvable:$true] %s410
      %416 = dma.vmem_to_hbm [thread:$0]  %s411, 256, %s5, [#allocation4], 128, 128, 8
    $region37: #{tpu_custom_call.1} parent=1 // pred_fallthru
      _
    // Predicated region
    $region38: #{tpu_custom_call.1} parent=1 // pred_check
      _
    $region39: #{tpu_custom_call.1} parent=1 // pred_check_branch
      %418 = sbr.rel (0) target = $region41
    $region40: #{tpu_custom_call.1} parent=1 // pred_region
      %419 = dma.done [#allocation4], 256
    $region41: #{tpu_custom_call.1} parent=1 // pred_fallthru
      _
    %420 = vsyncpa [#allocation3], 1
    %421 = vsyncpa [#allocation6], 1
    %422 = vsyncpa [#allocation4], 1

</llo_original>
